<compile_context>
chip_gen: v6e
topology: v6e:2x2x1
jax: 0.10.0
libtpu: 0.0.40
codegen_flags: <defaults>
</compile_context>

<pallas_src>
import math
import numpy as np
import jax
import jax.numpy as jnp
from jax import lax
from jax.experimental import pallas as pl
from jax.experimental.pallas import tpu as pltpu


# ---------------------------------------------------------------------------
# Deterministic parameter construction (mirrors gaussian_kernel / create_gaussian_kernel)
# ---------------------------------------------------------------------------
def gaussian_kernel_1d(window_size, sigma=1.5):
    g = np.array(
        [math.exp(-((x - window_size // 2) ** 2) / float(2 * sigma ** 2))
         for x in range(window_size)],
        dtype=np.float32,
    )
    return g / g.sum()


def create_gaussian_kernel(window_size, sigma=1.5, channel=3):
    g1 = gaussian_kernel_1d(window_size, sigma)[None, :]           # (1, K)
    g2 = g1.T @ g1                                                  # (K, K)
    k = np.broadcast_to(g2, (channel, window_size, window_size))   # (C, K, K)
    return jnp.asarray(np.ascontiguousarray(k))


def _banded_matrices(window_size, sigma, H, W, pad):
    """Banded operators with zero padding baked in.

    A : (Ho, H)   vertical pass,   out_rows = A @ rows
    B : (W, Wo)   horizontal pass, out_cols = cols @ B
    """
    K = window_size
    g = gaussian_kernel_1d(K, sigma)
    Ho = H + 2 * pad - K + 1
    Wo = W + 2 * pad - K + 1
    A = np.zeros((Ho, H), dtype=np.float32)
    for i in range(Ho):
        for u in range(K):
            j = i + u - pad
            if 0 <= j < H:
                A[i, j] = g[u]
    B = np.zeros((W, Wo), dtype=np.float32)
    for p in range(Wo):
        for v in range(K):
            w = p + v - pad
            if 0 <= w < W:
                B[w, p] = g[v]
    return jnp.asarray(A), jnp.asarray(B), Ho, Wo


# ---------------------------------------------------------------------------
# Pallas kernel: separable depthwise Gaussian blur as two MXU matmuls
# ---------------------------------------------------------------------------
def _make_kernel(C, H, W, Ho, Wo):
    def gauss_conv_kernel(a_ref, b_ref, x_ref, o_ref):
        # a_ref: (Ho, H)  f32  vertical banded Gaussian operator
        # b_ref: (W, Wo)  f32  horizontal banded Gaussian operator
        # x_ref: (C, H, W)     one image (leading batch dim squeezed)
        # o_ref: (C, Ho, Wo)
        x = x_ref[...].astype(jnp.float32)                       # (C, H, W)

        # Horizontal pass on the MXU: one tall matmul, M = C*H.
        t = jnp.dot(x.reshape(C * H, W), b_ref[...],
                    preferred_element_type=jnp.float32)          # (C*H, Wo)
        t = t.reshape(C, H, Wo)                                  # layout-preserving split

        # Vertical pass on the MXU, batched over channels (A broadcast).
        a_b = jnp.broadcast_to(a_ref[...], (C, Ho, H))           # tiny constant operand
        out = lax.dot_general(
            a_b, t,
            dimension_numbers=(((2,), (1,)), ((0,), (0,))),
            preferred_element_type=jnp.float32)                  # (C, Ho, Wo)

        o_ref[...] = out.astype(o_ref.dtype)

    return gauss_conv_kernel


def gaussian_conv(x, window_size, sigma=1.5):
    """Equivalent of GaussianConv(window_size, sigma, C).forward(x), x NCHW."""
    N, C, H, W = x.shape
    pad = (window_size // 2) // 2            # module uses self.padding // 2
    A, B, Ho, Wo = _banded_matrices(window_size, sigma, H, W, pad)

    return pl.pallas_call(
        _make_kernel(C, H, W, Ho, Wo),
        out_shape=jax.ShapeDtypeStruct((N, C, Ho, Wo), x.dtype),
        grid_spec=pltpu.PrefetchScalarGridSpec(
            num_scalar_prefetch=0,
            grid=(N,),
            in_specs=[
                pl.BlockSpec((Ho, H), lambda n: (0, 0)),              # A (broadcast)
                pl.BlockSpec((W, Wo), lambda n: (0, 0)),              # B (broadcast)
                pl.BlockSpec((None, C, H, W), lambda n: (n, 0, 0, 0)),
            ],
            out_specs=pl.BlockSpec((None, C, Ho, Wo), lambda n: (n, 0, 0, 0)),
        ),
        compiler_params=pltpu.CompilerParams(
            dimension_semantics=("parallel",),
        ),
    )(A, B, x)


# ---------------------------------------------------------------------------
# Reference (pure JAX) for correctness checking
# ---------------------------------------------------------------------------
def gaussian_conv_ref(x, kernel2d, window_size):
    C = x.shape[1]
    pad = (window_size // 2) // 2
    w = kernel2d[:, None, :, :]  # (C, 1, K, K) depthwise
    return lax.conv_general_dilated(
        x, w,
        window_strides=(1, 1),
        padding=((pad, pad), (pad, pad)),
        dimension_numbers=("NCHW", "OIHW", "NCHW"),
        feature_group_count=C,
    )


if __name__ == "__main__":
    window_size = 5
    sigma = 1.5
    in_channels = 4

    key = jax.random.PRNGKey(0)
    x = jax.random.normal(key, (2, in_channels, 16, 16), dtype=jnp.float32)

    out = gaussian_conv(x, window_size, sigma)
    out = jax.block_until_ready(out)

    kernel2d = create_gaussian_kernel(window_size, sigma, in_channels)
    ref = gaussian_conv_ref(x, kernel2d, window_size)
    np.testing.assert_allclose(np.asarray(out), np.asarray(ref), rtol=1e-5, atol=1e-5)

    print("KERNEL_OK")
</pallas_src>

<mosaic_0001>
module attributes {stable_mosaic.version = 11 : i64} {
  func.func @gauss_conv_kernel(%arg0: i32, %arg1: memref<14x16xf32, #tpu.memory_space<vmem>>, %arg2: memref<16x14xf32, #tpu.memory_space<vmem>>, %arg3: memref<1x4x16x16xf32, #tpu.memory_space<vmem>>, %arg4: memref<1x4x14x14xf32, #tpu.memory_space<vmem>>) attributes {dimension_semantics = [#tpu.dimension_semantics<parallel>], iteration_bounds = array<i64: 2>, scalar_prefetch = 0 : i64, scratch_operands = 0 : i64, tpu.core_type = #tpu.core_type<tc>, window_params = [{pipeline_mode = #tpu.pipeline_mode<synchronous>, transform_indices = @transform_0, window_bounds = array<i64: 14, 16>}, {pipeline_mode = #tpu.pipeline_mode<synchronous>, transform_indices = @transform_1, window_bounds = array<i64: 16, 14>}, {transform_indices = @transform_2, window_bounds = array<i64: 1, 4, 16, 16>}, {transform_indices = @transform_3, window_bounds = array<i64: 1, 4, 14, 14>}]} {
    %c0 = arith.constant 0 : index
    %c0_0 = arith.constant 0 : index
    %c0_1 = arith.constant 0 : index
    %c0_2 = arith.constant 0 : index
    %0 = vector.load %arg3[%c0, %c0_0, %c0_1, %c0_2] : memref<1x4x16x16xf32, #tpu.memory_space<vmem>>, vector<1x4x16x16xf32>
    %1 = vector.shape_cast %0 : vector<1x4x16x16xf32> to vector<4x16x16xf32>
    %2 = vector.shape_cast %1 : vector<4x16x16xf32> to vector<64x16xf32>
    %c0_3 = arith.constant 0 : index
    %c0_4 = arith.constant 0 : index
    %3 = vector.load %arg2[%c0_3, %c0_4] : memref<16x14xf32, #tpu.memory_space<vmem>>, vector<16x14xf32>
    %cst = arith.constant dense<0.000000e+00> : vector<64x14xf32>
    %4 = tpu.matmul %2, %3, %cst {dimension_numbers = #tpu.dot_dimension_numbers<[1], [0], [0], [1], [0, 0, 1, 1], [], []>} : vector<64x16xf32>, vector<16x14xf32>, vector<64x14xf32> -> vector<64x14xf32>
    %5 = vector.shape_cast %4 : vector<64x14xf32> to vector<4x16x14xf32>
    %c0_5 = arith.constant 0 : index
    %c0_6 = arith.constant 0 : index
    %6 = vector.load %arg1[%c0_5, %c0_6] : memref<14x16xf32, #tpu.memory_space<vmem>>, vector<14x16xf32>
    %7 = vector.shape_cast %6 : vector<14x16xf32> to vector<1x14x16xf32>
    %8 = vector.broadcast %7 : vector<1x14x16xf32> to vector<4x14x16xf32>
    %cst_7 = arith.constant dense<0.000000e+00> : vector<4x14x14xf32>
    %9 = tpu.matmul %8, %5, %cst_7 {dimension_numbers = #tpu.dot_dimension_numbers<[2], [1], [1], [2], [0, 0, 0, 1, 1, 2], [0], [0]>} : vector<4x14x16xf32>, vector<4x16x14xf32>, vector<4x14x14xf32> -> vector<4x14x14xf32>
    %c0_8 = arith.constant 0 : index
    %c0_9 = arith.constant 0 : index
    %c0_10 = arith.constant 0 : index
    %c0_11 = arith.constant 0 : index
    %10 = vector.load %arg4[%c0_8, %c0_9, %c0_10, %c0_11] : memref<1x4x14x14xf32, #tpu.memory_space<vmem>>, vector<1x4x14x14xf32>
    %11 = vector.shape_cast %10 : vector<1x4x14x14xf32> to vector<4x14x14xf32>
    %12 = vector.shape_cast %9 : vector<4x14x14xf32> to vector<1x4x14x14xf32>
    tpu.vector_store %arg4[%c0_8, %c0_9, %c0_10, %c0_11], %12 {strides = array<i32>} : memref<1x4x14x14xf32, #tpu.memory_space<vmem>>, vector<1x4x14x14xf32>,
    return
  }
  func.func @transform_0(%arg0: i32) -> (i32, i32) {
    %c0_i32 = arith.constant 0 : i32
    %c0_i32_0 = arith.constant 0 : i32
    %c0_i32_1 = arith.constant 0 : i32
    return %c0_i32, %c0_i32_0 : i32, i32
  }
  func.func @transform_1(%arg0: i32) -> (i32, i32) {
    %c0_i32 = arith.constant 0 : i32
    %c0_i32_0 = arith.constant 0 : i32
    %c0_i32_1 = arith.constant 0 : i32
    return %c0_i32, %c0_i32_0 : i32, i32
  }
  func.func @transform_2(%arg0: i32) -> (i32, i32, i32, i32) {
    %c0_i32 = arith.constant 0 : i32
    %c0_i32_0 = arith.constant 0 : i32
    %c0_i32_1 = arith.constant 0 : i32
    %c0_i32_2 = arith.constant 0 : i32
    return %arg0, %c0_i32, %c0_i32_0, %c0_i32_1 : i32, i32, i32, i32
  }
  func.func @transform_3(%arg0: i32) -> (i32, i32, i32, i32) {
    %c0_i32 = arith.constant 0 : i32
    %c0_i32_0 = arith.constant 0 : i32
    %c0_i32_1 = arith.constant 0 : i32
    %c0_i32_2 = arith.constant 0 : i32
    return %arg0, %c0_i32, %c0_i32_0, %c0_i32_1 : i32, i32, i32, i32
  }
}

</mosaic_0001>

<llo_original>
// kernel: tpu_custom_call.1
$region0: #{tpu_custom_call.1}
  #allocation0 [shape = 'u32[]', space=smem, size = 0x4, offset = 0x4, fixed_abs, tag = 'smem constant byte address 0x4 - core index']
  #allocation1 [shape = 'u32[144,128]{1,0:T(1,128)}', space=vmem, size = 0x12000, scoped, tag = 'internal scratch']
  %s0 = inlined_call_operand.hbm [shape: f32[14,16], index: 0, kind: input, shape index: {}]
  %s1 = inlined_call_operand.hbm [shape: f32[16,14], index: 1, kind: input, shape index: {}]
  %s2 = inlined_call_operand.hbm [shape: f32[2,4,16,16], index: 2, kind: input, shape index: {}]
  %s3 = inlined_call_operand.vmem [shape: f32[2,4,14,14], index: 3, kind: output, shape index: {}]
  %s4 = sld [smem:[#allocation0]]
  $region57: #{tpu_custom_call.1} parent=0
    _
  %s6 = ssub.s32 1, %s4
  %s7 = scalar_select 0, %s6, %s4
  $region1: #{tpu_custom_call.1} parent=0
    #allocation2 [shape = 'u8[8192]{0}', space=vmem, size = 0x2000, scoped, tag = 'input window, operand 0, single buffered']
    #allocation3 [shape = 's32[2]{0}', space=sflag, size = 0x8, scoped, tag = 'scoped memory for tpu_custom_call.1']
    #allocation4 [shape = 'u8[8192]{0}', space=vmem, size = 0x2000, scoped, tag = 'input window, operand 1, single buffered']
    #allocation5 [shape = 's32[1]{0}', space=sflag, size = 0x4, scoped, tag = 'scoped memory for tpu_custom_call.1']
    #allocation6 [shape = 'u8[65536]{0}', space=vmem, size = 0x10000, scoped, tag = 'input window, operand 2']
    %8 = vsyncpa [#allocation3], 0
    %9 = vsyncpa [#allocation5], 0
    loop: start=0, step=1, limit=4
    $region2: #{tpu_custom_call.1} parent=1 // loop_pre_header
      _
    $region3: #{tpu_custom_call.1} parent=1 // loop_header
      %s11 = sphi 0, %s15
      %p12 = scmp.ge.s32.totalorder %s11, 4
      %s19 = sphi 0, %s19
      %s21 = sphi 0, %s19
      %s22 = sphi 0, %s21
      %s36 = sphi 0, %s22
      %s40 = sphi 0, %s40
      %s42 = sphi 0, %s40
      %s43 = sphi 0, %s42
      %s57 = sphi 0, %s43
      %s63 = sphi 0, %s65
      %s66 = sphi 0, %s63
      %s67 = sphi 0, %s66
      %s83 = sphi 0, %s67
      %s89 = sphi 0, %s91
      %s92 = sphi 0, %s89
      %s93 = sphi 0, %s92
      %s109 = sphi 0, %s93
    $region4: #{tpu_custom_call.1} parent=1 // loop_header_branch
      %14 = sbr.rel (%p12) target = $region8
    $region5: #{tpu_custom_call.1} parent=1 // loop_body
      %s16 = ssub.s32 %s11, 1
      %s17 = ssub.s32 %s11, 2
      %s18 = sadd.s32 %s11, 1
      %s20 = sadd.s32 %s19, 1
      %p23 = scmp.eq.s32.totalorder %s11, 1
      %p24 = scmp.ne.s32.totalorder %s19, %s21
      %p25 = scmp.eq.s32.totalorder %s11, 0
      %p26 = por %p24, %p25
      %p27 = scmp.ne.s32.totalorder %s19, %s21
      %p28 = scmp.eq.s32.totalorder %s16, 1
      %p29 = por %p27, %p28
      %p30 = scmp.ne.s32.totalorder %s21, %s22
      %p31 = scmp.eq.s32.totalorder %s16, 0
      %p32 = por %p30, %p31
      %p33 = scmp.ne.s32.totalorder %s21, %s22
      %p34 = scmp.eq.s32.totalorder %s17, 1
      %p35 = por %p33, %p34
      %p37 = scmp.ne.s32.totalorder %s22, %s36
      %p38 = scmp.eq.s32.totalorder %s17, 0
      %p39 = por %p37, %p38
      %s41 = sadd.s32 %s40, 1
      %p44 = scmp.eq.s32.totalorder %s11, 1
      %p45 = scmp.ne.s32.totalorder %s40, %s42
      %p46 = scmp.eq.s32.totalorder %s11, 0
      %p47 = por %p45, %p46
      %p48 = scmp.ne.s32.totalorder %s40, %s42
      %p49 = scmp.eq.s32.totalorder %s16, 1
      %p50 = por %p48, %p49
      %p51 = scmp.ne.s32.totalorder %s42, %s43
      %p52 = scmp.eq.s32.totalorder %s16, 0
      %p53 = por %p51, %p52
      %p54 = scmp.ne.s32.totalorder %s42, %s43
      %p55 = scmp.eq.s32.totalorder %s17, 1
      %p56 = por %p54, %p55
      %p58 = scmp.ne.s32.totalorder %s43, %s57
      %p59 = scmp.eq.s32.totalorder %s17, 0
      %p60 = por %p58, %p59
      %s61 = ssub.s32 %s11, %s18
      %p62 = scmp.eq.s32.totalorder %s61, 0
      %s64 = sadd.s32 %s63, 1
      %s65 = scalar_select %p62, %s63, %s64
      %p68 = pneg %p62
      %p69 = scmp.eq.s32.totalorder %s11, 1
      %p70 = por %p68, %p69
      %p71 = scmp.ne.s32.totalorder %s63, %s66
      %p72 = scmp.eq.s32.totalorder %s11, 0
      %p73 = por %p71, %p72
      %p74 = scmp.ne.s32.totalorder %s63, %s66
      %p75 = scmp.eq.s32.totalorder %s16, 1
      %p76 = por %p74, %p75
      %p77 = scmp.ne.s32.totalorder %s66, %s67
      %p78 = scmp.eq.s32.totalorder %s16, 0
      %p79 = por %p77, %p78
      %p80 = scmp.ne.s32.totalorder %s66, %s67
      %p81 = scmp.eq.s32.totalorder %s17, 1
      %p82 = por %p80, %p81
      %p84 = scmp.ne.s32.totalorder %s67, %s83
      %p85 = scmp.eq.s32.totalorder %s17, 0
      %p86 = por %p84, %p85
      %s87 = ssub.s32 %s11, %s18
      %p88 = scmp.eq.s32.totalorder %s87, 0
      %s90 = sadd.s32 %s89, 1
      %s91 = scalar_select %p88, %s89, %s90
      %p94 = pneg %p88
      %p95 = scmp.eq.s32.totalorder %s11, 1
      %p96 = por %p94, %p95
      %p97 = scmp.ne.s32.totalorder %s89, %s92
      %p98 = scmp.eq.s32.totalorder %s11, 0
      %p99 = por %p97, %p98
      %p100 = scmp.ne.s32.totalorder %s89, %s92
      %p101 = scmp.eq.s32.totalorder %s16, 1
      %p102 = por %p100, %p101
      %p103 = scmp.ne.s32.totalorder %s92, %s93
      %p104 = scmp.eq.s32.totalorder %s16, 0
      %p105 = por %p103, %p104
      %p106 = scmp.ne.s32.totalorder %s92, %s93
      %p107 = scmp.eq.s32.totalorder %s17, 1
      %p108 = por %p106, %p107
      %p110 = scmp.ne.s32.totalorder %s93, %s109
      %p111 = scmp.eq.s32.totalorder %s17, 0
      %p112 = por %p110, %p111
      %p113 = scmp.le.s32.totalorder 1, %s11
      %p114 = scmp.lt.s32.totalorder %s11, 3
      %p115 = pnand %p113, %p114
      %p116 = pneg %p115
      // Predicated region
      $region9: #{tpu_custom_call.1} parent=5 // pred_check
        _
      $region10: #{tpu_custom_call.1} parent=5 // pred_check_branch
        %118 = sbr.rel (%p115) target = $region12
      $region11: #{tpu_custom_call.1} parent=5 // pred_region
        %s119 = ssub.s32 %s11, 1
        // Predicated region
        $region13: #{tpu_custom_call.1} parent=11 // pred_check
          %p120 = pneg %p32
        $region14: #{tpu_custom_call.1} parent=11 // pred_check_branch
          %122 = sbr.rel (%p120) target = $region16
        $region15: #{tpu_custom_call.1} parent=11 // pred_region
          %s124 = ssub.s32 256, 256
          %125 = vsyncadd [#allocation3], %s124
          %s126 = sshll.u32 [#allocation2], 4
          %s127 = int_to_ptr.vmem [resolvable:$true] %s126
          %132 = dma.hbm_to_vmem [thread:$0]  %s0, 256, %s127, [#allocation3], 128, 128, 8
        $region16: #{tpu_custom_call.1} parent=11 // pred_fallthru
          _
        // Predicated region
        $region17: #{tpu_custom_call.1} parent=11 // pred_check
          %p133 = pneg %p53
        $region18: #{tpu_custom_call.1} parent=11 // pred_check_branch
          %135 = sbr.rel (%p133) target = $region20
        $region19: #{tpu_custom_call.1} parent=11 // pred_region
          %s137 = ssub.s32 256, 256
          %138 = vsyncadd [#allocation5], %s137
          %s139 = sshll.u32 [#allocation4], 4
          %s140 = int_to_ptr.vmem [resolvable:$true] %s139
          %145 = dma.hbm_to_vmem [thread:$0]  %s1, 256, %s140, [#allocation5], 128, 128, 8
        $region20: #{tpu_custom_call.1} parent=11 // pred_fallthru
          _
      $region12: #{tpu_custom_call.1} parent=5 // pred_fallthru
        _
      %p146 = scmp.lt.s32.totalorder %s11, 2
      // Predicated region
      $region21: #{tpu_custom_call.1} parent=5 // pred_check
        %p147 = pneg %p146
      $region22: #{tpu_custom_call.1} parent=5 // pred_check_branch
        %149 = sbr.rel (%p147) target = $region24
      $region23: #{tpu_custom_call.1} parent=5 // pred_region
        // Predicated region
        $region25: #{tpu_custom_call.1} parent=23 // pred_check
          %p150 = pneg %p73
        $region26: #{tpu_custom_call.1} parent=23 // pred_check_branch
          %152 = sbr.rel (%p150) target = $region28
        $region27: #{tpu_custom_call.1} parent=23 // pred_region
          %s153 = sand.u32 %s11, 1
          %s154 = scalar_lea.sflag [#allocation3], %s153
          %s155 = sand.u32 %s63, 1
          %s156 = smul.addr %s155, 64
          %s157 = scalar_lea.vmem [#allocation6], %s156
          %s159 = ssub.s32 1024, 1024
          %160 = vsyncadd %s154, %s159
          %s161 = smul.addr %s11, 8
          %s162 = smul.addr %s161, 128
          %s163 = scalar_lea.hbm %s2, %s162
          %s164 = sshll.u32 %s157, 4
          %s165 = int_to_ptr.vmem [resolvable:$true] %s164
          %170 = dma.hbm_to_vmem [thread:$0]  %s163, 1024, %s165, %s154, 128, 128, 8
        $region28: #{tpu_custom_call.1} parent=23 // pred_fallthru
          _
      $region24: #{tpu_custom_call.1} parent=5 // pred_fallthru
        _
      %p171 = scmp.le.s32.totalorder 1, %s11
      %p172 = scmp.lt.s32.totalorder %s11, 3
      %p173 = pnand %p171, %p172
      %p174 = pneg %p173
      // Predicated region
      $region29: #{tpu_custom_call.1} parent=5 // pred_check
        _
      $region30: #{tpu_custom_call.1} parent=5 // pred_check_branch
        %176 = sbr.rel (%p173) target = $region32
      $region31: #{tpu_custom_call.1} parent=5 // pred_region
        %s177 = ssub.s32 %s11, 1
        // Predicated region
        $region33: #{tpu_custom_call.1} parent=31 // pred_check
          %p178 = pneg %p32
        $region34: #{tpu_custom_call.1} parent=31 // pred_check_branch
          %180 = sbr.rel (%p178) target = $region36
        $region35: #{tpu_custom_call.1} parent=31 // pred_region
          %181 = dma.done [#allocation3], 256
        $region36: #{tpu_custom_call.1} parent=31 // pred_fallthru
          _
        // Predicated region
        $region37: #{tpu_custom_call.1} parent=31 // pred_check
          %p182 = pneg %p53
        $region38: #{tpu_custom_call.1} parent=31 // pred_check_branch
          %184 = sbr.rel (%p182) target = $region40
        $region39: #{tpu_custom_call.1} parent=31 // pred_region
          %185 = dma.done [#allocation5], 256
        $region40: #{tpu_custom_call.1} parent=31 // pred_fallthru
          _
        %s186 = sand.u32 %s16, 1
        %s187 = scalar_lea.sflag [#allocation3], %s186
        %s188 = sand.u32 %s66, 1
        %s189 = smul.addr %s188, 64
        %s190 = scalar_lea.vmem [#allocation6], %s189
        // Predicated region
        $region41: #{tpu_custom_call.1} parent=31 // pred_check
          %p191 = pneg %p79
        $region42: #{tpu_custom_call.1} parent=31 // pred_check_branch
          %193 = sbr.rel (%p191) target = $region44
        $region43: #{tpu_custom_call.1} parent=31 // pred_region
          %194 = dma.done %s187, 1024
        $region44: #{tpu_custom_call.1} parent=31 // pred_fallthru
          _
        %p195 = pneg %p32
        %p196 = pneg %p29
        %p197 = pneg %p53
        %p198 = pneg %p50
        %s199 = sand.u32 %s16, 1
        %s200 = scalar_lea.sflag [#allocation3], %s199
        %s201 = sand.u32 %s66, 1
        %s202 = smul.addr %s201, 64
        %s203 = scalar_lea.vmem [#allocation6], %s202
        %p204 = pneg %p79
        %p205 = pneg %p76
        %p206 = pneg %p105
        %p207 = pneg %p102
        %p208 = scmp.lt.s32.totalorder %s16, 1
        %s209 = scalar_select %p208, %s16, 1
        %s210 = smul.addr %s209, 8
        %s211 = smul.addr %s210, 8
        %s212 = scalar_lea.vmem %s3, %s211
        %p213 = scmp.lt.s32.totalorder %s16, 1
        %s214 = scalar_select %p213, %s16, 1
        %s215 = smul.addr %s214, 8
        %s216 = smul.addr %s215, 8
        %s217 = scalar_lea.vmem %s3, %s216
        %v218 = vld [vmem:[%s190] sm:$0xff]
        %v219 = vld [vmem:[%s190 + $0x8] sm:$0xff]
        %v220 = vld [vmem:[%s190 + $0x10] sm:$0xff]
        %v221 = vld [vmem:[%s190 + $0x18] sm:$0xff]
        %v222 = vld [vmem:[%s190 + $0x20] sm:$0xff]
        %v223 = vld [vmem:[%s190 + $0x28] sm:$0xff]
        %v224 = vld [vmem:[%s190 + $0x30] sm:$0xff]
        %v225 = vld [vmem:[%s190 + $0x38] sm:$0xff]
        %v226 = vld [vmem:[#allocation4] sm:$0xff]
        %v227 = vld [vmem:[#allocation4 + $0x8] sm:$0xff]
        %vm228 = vcmask 130048
        %v230 = vsel %vm228, %v218, 0
        %v233 = vsel %vm228, %v219, 0
        %v236 = vsel %vm228, %v220, 0
        %v239 = vsel %vm228, %v221, 0
        %v242 = vsel %vm228, %v222, 0
        %v245 = vsel %vm228, %v223, 0
        %v248 = vsel %vm228, %v224, 0
        %v251 = vsel %vm228, %v225, 0
        %253 = vmatprep.subr.mxu0 0.0
        %254 = vmatpush1.msra.mxu0 0.0
        %255 = vmatprep.subr.mxu0 0.0
        %256 = vmatpush1.msra.mxu0 0.0
        %257 = vmatprep.subr.mxu0 0.0
        %258 = vmatpush1.msra.mxu0 0.0
        %259 = vmatprep.subr.mxu0 0.0
        %260 = vmatpush1.msra.mxu0 0.0
        %261 = vmatprep.subr.mxu0 0.0
        %262 = vmatpush1.msra.mxu0 0.0
        %263 = vmatprep.subr.mxu0 0.0
        %264 = vmatpush1.msra.mxu0 0.0
        %265 = vmatprep.subr.mxu0 0.0
        %266 = vmatpush1.msra.mxu0 0.0
        %267 = vmatprep.subr.mxu0 0.0
        %268 = vmatpush1.msra.mxu0 0.0
        %269 = vmatprep.subr.mxu0 0.0
        %270 = vmatpush1.msra.mxu0 0.0
        %271 = vmatprep.subr.mxu0 0.0
        %272 = vmatpush1.msra.mxu0 0.0
        %273 = vmatprep.subr.mxu0 0.0
        %274 = vmatpush1.msra.mxu0 0.0
        %275 = vmatprep.subr.mxu0 0.0
        %276 = vmatpush1.msra.mxu0 0.0
        %277 = vmatprep.subr.mxu0 0.0
        %278 = vmatpush1.msra.mxu0 0.0
        %279 = vmatprep.subr.mxu0 0.0
        %280 = vmatpush1.msra.mxu0 0.0
        %281 = vmatprep.subr.mxu0 0.0
        %282 = vmatpush1.msra.mxu0 %v227
        %283 = vmatprep.subr.mxu0 0.0
        %284 = vmatpush1.msra.mxu0 %v226
        %285 = vmatprep.subr.mxu0 0.0
        %286 = vmatpush2.msra.mxu0 0.0
        %287 = vmatprep.subr.mxu0 0.0
        %288 = vmatpush2.msra.mxu0 0.0
        %289 = vmatprep.subr.mxu0 0.0
        %290 = vmatpush2.msra.mxu0 0.0
        %291 = vmatprep.subr.mxu0 0.0
        %292 = vmatpush2.msra.mxu0 0.0
        %293 = vmatprep.subr.mxu0 0.0
        %294 = vmatpush2.msra.mxu0 0.0
        %295 = vmatprep.subr.mxu0 0.0
        %296 = vmatpush2.msra.mxu0 0.0
        %297 = vmatprep.subr.mxu0 0.0
        %298 = vmatpush2.msra.mxu0 0.0
        %299 = vmatprep.subr.mxu0 0.0
        %300 = vmatpush2.msra.mxu0 0.0
        %301 = vmatprep.subr.mxu0 0.0
        %302 = vmatpush2.msra.mxu0 0.0
        %303 = vmatprep.subr.mxu0 0.0
        %304 = vmatpush2.msra.mxu0 0.0
        %305 = vmatprep.subr.mxu0 0.0
        %306 = vmatpush2.msra.mxu0 0.0
        %307 = vmatprep.subr.mxu0 0.0
        %308 = vmatpush2.msra.mxu0 0.0
        %309 = vmatprep.subr.mxu0 0.0
        %310 = vmatpush2.msra.mxu0 0.0
        %311 = vmatprep.subr.mxu0 0.0
        %312 = vmatpush2.msra.mxu0 0.0
        %313 = vmatprep.subr.mxu0 0.0
        %314 = vmatpush2.msra.mxu0 0.0
        %315 = vmatprep.subr.mxu0 0.0
        %316 = vmatpush2.msra.mxu0 0.0
        %317 = vmatprep.mubr.f32.mxu0 0.0
        %318 = vmatmul.mubr.f32.gmra.mxu0 %v230
        %v319 = vpop.f32.mrf.mxu0
        %v320 = vadd.f32 0.0, %v319
        %v321 = vpop.f32.mrf.mxu0
        %322 = vmatprep.mubr.f32.mxu0 0.0
        %323 = vmatmul.mubr.f32.gmra.mxu0 %v233
        %v324 = vpop.f32.mrf.mxu0
        %v325 = vadd.f32 0.0, %v324
        %v326 = vpop.f32.mrf.mxu0
        %327 = vmatprep.mubr.f32.mxu0 0.0
        %328 = vmatmul.mubr.f32.gmra.mxu0 %v236
        %v329 = vpop.f32.mrf.mxu0
        %v330 = vadd.f32 0.0, %v329
        %v331 = vpop.f32.mrf.mxu0
        %332 = vmatprep.mubr.f32.mxu0 0.0
        %333 = vmatmul.mubr.f32.gmra.mxu0 %v239
        %v334 = vpop.f32.mrf.mxu0
        %v335 = vadd.f32 0.0, %v334
        %v336 = vpop.f32.mrf.mxu0
        %337 = vmatprep.mubr.f32.mxu0 0.0
        %338 = vmatmul.mubr.f32.gmra.mxu0 %v242
        %v339 = vpop.f32.mrf.mxu0
        %v340 = vadd.f32 0.0, %v339
        %v341 = vpop.f32.mrf.mxu0
        %342 = vmatprep.mubr.f32.mxu0 0.0
        %343 = vmatmul.mubr.f32.gmra.mxu0 %v245
        %v344 = vpop.f32.mrf.mxu0
        %v345 = vadd.f32 0.0, %v344
        %v346 = vpop.f32.mrf.mxu0
        %347 = vmatprep.mubr.f32.mxu0 0.0
        %348 = vmatmul.mubr.f32.gmra.mxu0 %v248
        %v349 = vpop.f32.mrf.mxu0
        %v350 = vadd.f32 0.0, %v349
        %v351 = vpop.f32.mrf.mxu0
        %352 = vmatprep.mubr.f32.mxu0 0.0
        %353 = vmatmul.mubr.f32.gmra.mxu0 %v251
        %v354 = vpop.f32.mrf.mxu0
        %v355 = vadd.f32 0.0, %v354
        %v356 = vpop.f32.mrf.mxu0
        %357 = vdwg.mxu0
        %v358 = vld [vmem:[#allocation2] sm:$0xff]
        %v359 = vld [vmem:[#allocation2 + $0x8] sm:$0x3f]
        %v361 = vsel %vm228, %v358, 0
        %v364 = vsel %vm228, %v359, 0
        %366 = vmatprep.subr.mxu0 0.0
        %367 = vmatpush1.msra.mxu0 0.0
        %368 = vmatprep.subr.mxu0 0.0
        %369 = vmatpush1.msra.mxu0 0.0
        %370 = vmatprep.subr.mxu0 0.0
        %371 = vmatpush1.msra.mxu0 0.0
        %372 = vmatprep.subr.mxu0 0.0
        %373 = vmatpush1.msra.mxu0 0.0
        %374 = vmatprep.subr.mxu0 0.0
        %375 = vmatpush1.msra.mxu0 0.0
        %376 = vmatprep.subr.mxu0 0.0
        %377 = vmatpush1.msra.mxu0 0.0
        %378 = vmatprep.subr.mxu0 0.0
        %379 = vmatpush1.msra.mxu0 0.0
        %380 = vmatprep.subr.mxu0 0.0
        %381 = vmatpush1.msra.mxu0 0.0
        %382 = vmatprep.subr.mxu0 0.0
        %383 = vmatpush1.msra.mxu0 0.0
        %384 = vmatprep.subr.mxu0 0.0
        %385 = vmatpush1.msra.mxu0 0.0
        %386 = vmatprep.subr.mxu0 0.0
        %387 = vmatpush1.msra.mxu0 0.0
        %388 = vmatprep.subr.mxu0 0.0
        %389 = vmatpush1.msra.mxu0 0.0
        %390 = vmatprep.subr.mxu0 0.0
        %391 = vmatpush1.msra.mxu0 0.0
        %392 = vmatprep.subr.mxu0 0.0
        %393 = vmatpush1.msra.mxu0 0.0
        %394 = vmatprep.subr.mxu0 0.0
        %395 = vmatpush1.msra.mxu0 %v325
        %396 = vmatprep.subr.mxu0 0.0
        %397 = vmatpush1.msra.mxu0 %v320
        %398 = vmatprep.subr.mxu0 0.0
        %399 = vmatpush2.msra.mxu0 0.0
        %400 = vmatprep.subr.mxu0 0.0
        %401 = vmatpush2.msra.mxu0 0.0
        %402 = vmatprep.subr.mxu0 0.0
        %403 = vmatpush2.msra.mxu0 0.0
        %404 = vmatprep.subr.mxu0 0.0
        %405 = vmatpush2.msra.mxu0 0.0
        %406 = vmatprep.subr.mxu0 0.0
        %407 = vmatpush2.msra.mxu0 0.0
        %408 = vmatprep.subr.mxu0 0.0
        %409 = vmatpush2.msra.mxu0 0.0
        %410 = vmatprep.subr.mxu0 0.0
        %411 = vmatpush2.msra.mxu0 0.0
        %412 = vmatprep.subr.mxu0 0.0
        %413 = vmatpush2.msra.mxu0 0.0
        %414 = vmatprep.subr.mxu0 0.0
        %415 = vmatpush2.msra.mxu0 0.0
        %416 = vmatprep.subr.mxu0 0.0
        %417 = vmatpush2.msra.mxu0 0.0
        %418 = vmatprep.subr.mxu0 0.0
        %419 = vmatpush2.msra.mxu0 0.0
        %420 = vmatprep.subr.mxu0 0.0
        %421 = vmatpush2.msra.mxu0 0.0
        %422 = vmatprep.subr.mxu0 0.0
        %423 = vmatpush2.msra.mxu0 0.0
        %424 = vmatprep.subr.mxu0 0.0
        %425 = vmatpush2.msra.mxu0 0.0
        %426 = vmatprep.subr.mxu0 0.0
        %427 = vmatpush2.msra.mxu0 0.0
        %428 = vmatprep.subr.mxu0 0.0
        %429 = vmatpush2.msra.mxu0 0.0
        %430 = vmatprep.mubr.f32.mxu0 0.0
        %431 = vmatmul.mubr.f32.gmra.mxu0 %v361
        %v432 = vpop.f32.mrf.mxu0
        %v433 = vadd.f32 0.0, %v432
        %v434 = vpop.f32.mrf.mxu0
        %435 = vmatprep.mubr.f32.mxu0 0.0
        %436 = vmatmul.mubr.f32.gmra.mxu0 %v364
        %v437 = vpop.f32.mrf.mxu0
        %v438 = vadd.f32 0.0, %v437
        %v439 = vpop.f32.mrf.mxu0
        %440 = vdwg.mxu0
        %441 = vmatprep.subr.mxu0 0.0
        %442 = vmatpush1.msra.mxu0 0.0
        %443 = vmatprep.subr.mxu0 0.0
        %444 = vmatpush1.msra.mxu0 0.0
        %445 = vmatprep.subr.mxu0 0.0
        %446 = vmatpush1.msra.mxu0 0.0
        %447 = vmatprep.subr.mxu0 0.0
        %448 = vmatpush1.msra.mxu0 0.0
        %449 = vmatprep.subr.mxu0 0.0
        %450 = vmatpush1.msra.mxu0 0.0
        %451 = vmatprep.subr.mxu0 0.0
        %452 = vmatpush1.msra.mxu0 0.0
        %453 = vmatprep.subr.mxu0 0.0
        %454 = vmatpush1.msra.mxu0 0.0
        %455 = vmatprep.subr.mxu0 0.0
        %456 = vmatpush1.msra.mxu0 0.0
        %457 = vmatprep.subr.mxu0 0.0
        %458 = vmatpush1.msra.mxu0 0.0
        %459 = vmatprep.subr.mxu0 0.0
        %460 = vmatpush1.msra.mxu0 0.0
        %461 = vmatprep.subr.mxu0 0.0
        %462 = vmatpush1.msra.mxu0 0.0
        %463 = vmatprep.subr.mxu0 0.0
        %464 = vmatpush1.msra.mxu0 0.0
        %465 = vmatprep.subr.mxu0 0.0
        %466 = vmatpush1.msra.mxu0 0.0
        %467 = vmatprep.subr.mxu0 0.0
        %468 = vmatpush1.msra.mxu0 0.0
        %469 = vmatprep.subr.mxu0 0.0
        %470 = vmatpush1.msra.mxu0 %v335
        %471 = vmatprep.subr.mxu0 0.0
        %472 = vmatpush1.msra.mxu0 %v330
        %473 = vmatprep.subr.mxu0 0.0
        %474 = vmatpush2.msra.mxu0 0.0
        %475 = vmatprep.subr.mxu0 0.0
        %476 = vmatpush2.msra.mxu0 0.0
        %477 = vmatprep.subr.mxu0 0.0
        %478 = vmatpush2.msra.mxu0 0.0
        %479 = vmatprep.subr.mxu0 0.0
        %480 = vmatpush2.msra.mxu0 0.0
        %481 = vmatprep.subr.mxu0 0.0
        %482 = vmatpush2.msra.mxu0 0.0
        %483 = vmatprep.subr.mxu0 0.0
        %484 = vmatpush2.msra.mxu0 0.0
        %485 = vmatprep.subr.mxu0 0.0
        %486 = vmatpush2.msra.mxu0 0.0
        %487 = vmatprep.subr.mxu0 0.0
        %488 = vmatpush2.msra.mxu0 0.0
        %489 = vmatprep.subr.mxu0 0.0
        %490 = vmatpush2.msra.mxu0 0.0
        %491 = vmatprep.subr.mxu0 0.0
        %492 = vmatpush2.msra.mxu0 0.0
        %493 = vmatprep.subr.mxu0 0.0
        %494 = vmatpush2.msra.mxu0 0.0
        %495 = vmatprep.subr.mxu0 0.0
        %496 = vmatpush2.msra.mxu0 0.0
        %497 = vmatprep.subr.mxu0 0.0
        %498 = vmatpush2.msra.mxu0 0.0
        %499 = vmatprep.subr.mxu0 0.0
        %500 = vmatpush2.msra.mxu0 0.0
        %501 = vmatprep.subr.mxu0 0.0
        %502 = vmatpush2.msra.mxu0 0.0
        %503 = vmatprep.subr.mxu0 0.0
        %504 = vmatpush2.msra.mxu0 0.0
        %505 = vmatprep.mubr.f32.mxu0 0.0
        %506 = vmatmul.mubr.f32.gmra.mxu0 %v361
        %v507 = vpop.f32.mrf.mxu0
        %v508 = vadd.f32 0.0, %v507
        %v509 = vpop.f32.mrf.mxu0
        %510 = vmatprep.mubr.f32.mxu0 0.0
        %511 = vmatmul.mubr.f32.gmra.mxu0 %v364
        %v512 = vpop.f32.mrf.mxu0
        %v513 = vadd.f32 0.0, %v512
        %v514 = vpop.f32.mrf.mxu0
        %515 = vdwg.mxu0
        %516 = vmatprep.subr.mxu0 0.0
        %517 = vmatpush1.msra.mxu0 0.0
        %518 = vmatprep.subr.mxu0 0.0
        %519 = vmatpush1.msra.mxu0 0.0
        %520 = vmatprep.subr.mxu0 0.0
        %521 = vmatpush1.msra.mxu0 0.0
        %522 = vmatprep.subr.mxu0 0.0
        %523 = vmatpush1.msra.mxu0 0.0
        %524 = vmatprep.subr.mxu0 0.0
        %525 = vmatpush1.msra.mxu0 0.0
        %526 = vmatprep.subr.mxu0 0.0
        %527 = vmatpush1.msra.mxu0 0.0
        %528 = vmatprep.subr.mxu0 0.0
        %529 = vmatpush1.msra.mxu0 0.0
        %530 = vmatprep.subr.mxu0 0.0
        %531 = vmatpush1.msra.mxu0 0.0
        %532 = vmatprep.subr.mxu0 0.0
        %533 = vmatpush1.msra.mxu0 0.0
        %534 = vmatprep.subr.mxu0 0.0
        %535 = vmatpush1.msra.mxu0 0.0
        %536 = vmatprep.subr.mxu0 0.0
        %537 = vmatpush1.msra.mxu0 0.0
        %538 = vmatprep.subr.mxu0 0.0
        %539 = vmatpush1.msra.mxu0 0.0
        %540 = vmatprep.subr.mxu0 0.0
        %541 = vmatpush1.msra.mxu0 0.0
        %542 = vmatprep.subr.mxu0 0.0
        %543 = vmatpush1.msra.mxu0 0.0
        %544 = vmatprep.subr.mxu0 0.0
        %545 = vmatpush1.msra.mxu0 %v345
        %546 = vmatprep.subr.mxu0 0.0
        %547 = vmatpush1.msra.mxu0 %v340
        %548 = vmatprep.subr.mxu0 0.0
        %549 = vmatpush2.msra.mxu0 0.0
        %550 = vmatprep.subr.mxu0 0.0
        %551 = vmatpush2.msra.mxu0 0.0
        %552 = vmatprep.subr.mxu0 0.0
        %553 = vmatpush2.msra.mxu0 0.0
        %554 = vmatprep.subr.mxu0 0.0
        %555 = vmatpush2.msra.mxu0 0.0
        %556 = vmatprep.subr.mxu0 0.0
        %557 = vmatpush2.msra.mxu0 0.0
        %558 = vmatprep.subr.mxu0 0.0
        %559 = vmatpush2.msra.mxu0 0.0
        %560 = vmatprep.subr.mxu0 0.0
        %561 = vmatpush2.msra.mxu0 0.0
        %562 = vmatprep.subr.mxu0 0.0
        %563 = vmatpush2.msra.mxu0 0.0
        %564 = vmatprep.subr.mxu0 0.0
        %565 = vmatpush2.msra.mxu0 0.0
        %566 = vmatprep.subr.mxu0 0.0
        %567 = vmatpush2.msra.mxu0 0.0
        %568 = vmatprep.subr.mxu0 0.0
        %569 = vmatpush2.msra.mxu0 0.0
        %570 = vmatprep.subr.mxu0 0.0
        %571 = vmatpush2.msra.mxu0 0.0
        %572 = vmatprep.subr.mxu0 0.0
        %573 = vmatpush2.msra.mxu0 0.0
        %574 = vmatprep.subr.mxu0 0.0
        %575 = vmatpush2.msra.mxu0 0.0
        %576 = vmatprep.subr.mxu0 0.0
        %577 = vmatpush2.msra.mxu0 0.0
        %578 = vmatprep.subr.mxu0 0.0
        %579 = vmatpush2.msra.mxu0 0.0
        %580 = vmatprep.mubr.f32.mxu0 0.0
        %581 = vmatmul.mubr.f32.gmra.mxu0 %v361
        %v582 = vpop.f32.mrf.mxu0
        %v583 = vadd.f32 0.0, %v582
        %v584 = vpop.f32.mrf.mxu0
        %585 = vmatprep.mubr.f32.mxu0 0.0
        %586 = vmatmul.mubr.f32.gmra.mxu0 %v364
        %v587 = vpop.f32.mrf.mxu0
        %v588 = vadd.f32 0.0, %v587
        %v589 = vpop.f32.mrf.mxu0
        %590 = vdwg.mxu0
        %591 = vmatprep.subr.mxu0 0.0
        %592 = vmatpush1.msra.mxu0 0.0
        %593 = vmatprep.subr.mxu0 0.0
        %594 = vmatpush1.msra.mxu0 0.0
        %595 = vmatprep.subr.mxu0 0.0
        %596 = vmatpush1.msra.mxu0 0.0
        %597 = vmatprep.subr.mxu0 0.0
        %598 = vmatpush1.msra.mxu0 0.0
        %599 = vmatprep.subr.mxu0 0.0
        %600 = vmatpush1.msra.mxu0 0.0
        %601 = vmatprep.subr.mxu0 0.0
        %602 = vmatpush1.msra.mxu0 0.0
        %603 = vmatprep.subr.mxu0 0.0
        %604 = vmatpush1.msra.mxu0 0.0
        %605 = vmatprep.subr.mxu0 0.0
        %606 = vmatpush1.msra.mxu0 0.0
        %607 = vmatprep.subr.mxu0 0.0
        %608 = vmatpush1.msra.mxu0 0.0
        %609 = vmatprep.subr.mxu0 0.0
        %610 = vmatpush1.msra.mxu0 0.0
        %611 = vmatprep.subr.mxu0 0.0
        %612 = vmatpush1.msra.mxu0 0.0
        %613 = vmatprep.subr.mxu0 0.0
        %614 = vmatpush1.msra.mxu0 0.0
        %615 = vmatprep.subr.mxu0 0.0
        %616 = vmatpush1.msra.mxu0 0.0
        %617 = vmatprep.subr.mxu0 0.0
        %618 = vmatpush1.msra.mxu0 0.0
        %619 = vmatprep.subr.mxu0 0.0
        %620 = vmatpush1.msra.mxu0 %v355
        %621 = vmatprep.subr.mxu0 0.0
        %622 = vmatpush1.msra.mxu0 %v350
        %623 = vmatprep.subr.mxu0 0.0
        %624 = vmatpush2.msra.mxu0 0.0
        %625 = vmatprep.subr.mxu0 0.0
        %626 = vmatpush2.msra.mxu0 0.0
        %627 = vmatprep.subr.mxu0 0.0
        %628 = vmatpush2.msra.mxu0 0.0
        %629 = vmatprep.subr.mxu0 0.0
        %630 = vmatpush2.msra.mxu0 0.0
        %631 = vmatprep.subr.mxu0 0.0
        %632 = vmatpush2.msra.mxu0 0.0
        %633 = vmatprep.subr.mxu0 0.0
        %634 = vmatpush2.msra.mxu0 0.0
        %635 = vmatprep.subr.mxu0 0.0
        %636 = vmatpush2.msra.mxu0 0.0
        %637 = vmatprep.subr.mxu0 0.0
        %638 = vmatpush2.msra.mxu0 0.0
        %639 = vmatprep.subr.mxu0 0.0
        %640 = vmatpush2.msra.mxu0 0.0
        %641 = vmatprep.subr.mxu0 0.0
        %642 = vmatpush2.msra.mxu0 0.0
        %643 = vmatprep.subr.mxu0 0.0
        %644 = vmatpush2.msra.mxu0 0.0
        %645 = vmatprep.subr.mxu0 0.0
        %646 = vmatpush2.msra.mxu0 0.0
        %647 = vmatprep.subr.mxu0 0.0
        %648 = vmatpush2.msra.mxu0 0.0
        %649 = vmatprep.subr.mxu0 0.0
        %650 = vmatpush2.msra.mxu0 0.0
        %651 = vmatprep.subr.mxu0 0.0
        %652 = vmatpush2.msra.mxu0 0.0
        %653 = vmatprep.subr.mxu0 0.0
        %654 = vmatpush2.msra.mxu0 0.0
        %655 = vmatprep.mubr.f32.mxu0 0.0
        %656 = vmatmul.mubr.f32.gmra.mxu0 %v361
        %v657 = vpop.f32.mrf.mxu0
        %v658 = vadd.f32 0.0, %v657
        %v659 = vpop.f32.mrf.mxu0
        %660 = vmatprep.mubr.f32.mxu0 0.0
        %661 = vmatmul.mubr.f32.gmra.mxu0 %v364
        %v662 = vpop.f32.mrf.mxu0
        %v663 = vadd.f32 0.0, %v662
        %v664 = vpop.f32.mrf.mxu0
        %665 = vdwg.mxu0
        %vm666 = vcmask 113664
        %667 = vst.msk [vmem:[%s217] sm:$0xff] %vm666, %v433
        %vm668 = vcmask 111616
        %669 = vst.msk [vmem:[%s217 + $0x8] sm:$0x3f] %vm668, %v438
        %670 = vst.msk [vmem:[%s217 + $0x10] sm:$0xff] %vm666, %v508
        %671 = vst.msk [vmem:[%s217 + $0x18] sm:$0x3f] %vm668, %v513
        %672 = vst.msk [vmem:[%s217 + $0x20] sm:$0xff] %vm666, %v583
        %673 = vst.msk [vmem:[%s217 + $0x28] sm:$0x3f] %vm668, %v588
        %674 = vst.msk [vmem:[%s217 + $0x30] sm:$0xff] %vm666, %v658
        %675 = vst.msk [vmem:[%s217 + $0x38] sm:$0x3f] %vm668, %v663
        %p676 = scmp.lt.s32.totalorder %s16, 1
        %s677 = scalar_select %p676, %s16, 1
        %s678 = smul.addr %s677, 8
        %s679 = smul.addr %s678, 8
        %s680 = scalar_lea.vmem %s3, %s679
        // Predicated region
        $region45: #{tpu_custom_call.1} parent=31 // pred_check
          %p681 = pneg %p102
        $region46: #{tpu_custom_call.1} parent=31 // pred_check_branch
          %683 = sbr.rel (%p681) target = $region48
        $region47: #{tpu_custom_call.1} parent=31 // pred_region
          _
        $region48: #{tpu_custom_call.1} parent=31 // pred_fallthru
          _
      $region32: #{tpu_custom_call.1} parent=5 // pred_fallthru
        _
      %p684 = scmp.le.s32.totalorder 2, %s11
      // Predicated region
      $region49: #{tpu_custom_call.1} parent=5 // pred_check
        %p685 = pneg %p684
      $region50: #{tpu_custom_call.1} parent=5 // pred_check_branch
        %687 = sbr.rel (%p685) target = $region52
      $region51: #{tpu_custom_call.1} parent=5 // pred_region
        %s688 = ssub.s32 %s11, 2
        // Predicated region
        $region53: #{tpu_custom_call.1} parent=51 // pred_check
          %p689 = pneg %p108
        $region54: #{tpu_custom_call.1} parent=51 // pred_check_branch
          %691 = sbr.rel (%p689) target = $region56
        $region55: #{tpu_custom_call.1} parent=51 // pred_region
          %p692 = scmp.lt.s32.totalorder %s17, 1
          %s693 = scalar_select %p692, %s17, 1
          %s694 = smul.addr %s693, 8
          %s695 = smul.addr %s694, 8
          %s696 = scalar_lea.vmem %s3, %s695
        $region56: #{tpu_custom_call.1} parent=51 // pred_fallthru
          _
      $region52: #{tpu_custom_call.1} parent=5 // pred_fallthru
        _
    $region6: #{tpu_custom_call.1} parent=1 // loop_footer
      %s15 = sadd.s32 1, %s11
    $region7: #{tpu_custom_call.1} parent=1 // loop_footer_branch
      %10 = sbr.rel target = $region3
    $region8: #{tpu_custom_call.1} parent=1 // loop_exit
      _
    %697 = vsyncpa [#allocation3], 1
    %s698 = scalar_lea.sflag [#allocation3], 1
    %699 = vsyncpa %s698, 1
    %700 = vsyncpa [#allocation5], 1

</llo_original>
